<compile_context>
chip_gen: v5e
topology: v5e:2x2
jax: 0.10.0
libtpu: 0.0.40
codegen_flags: <defaults>
</compile_context>

<pallas_src>
import jax
import jax.numpy as jnp
from jax.experimental import pallas as pl
from jax.experimental.pallas import tpu as pltpu


def _leaky_relu(x, slope=0.2):
    return jnp.where(x > 0, x, slope * x)


def _round_up(n, m):
    return ((n + m - 1) // m) * m


def discriminator_kernel(x_ref,
                         w1_ref, b1_ref,
                         w2_ref, b2_ref,
                         w3_ref, b3_ref,
                         w4t_ref, b4t_ref,
                         o_ref):
    # x tile: (TB, 784) in its source dtype; cast to bf16 on the VPU (hidden
    # under the DMA).  Weights bf16; biases f32; accumulation/activations f32.
    x = x_ref[...].astype(jnp.bfloat16)

    h = jnp.dot(x, w1_ref[...], preferred_element_type=jnp.float32) + b1_ref[...]
    h = _leaky_relu(h)                      # fc1 + leaky_relu (dropout: identity)

    h = jnp.dot(h.astype(jnp.bfloat16), w2_ref[...],
                preferred_element_type=jnp.float32) + b2_ref[...]
    h = _leaky_relu(h)                      # fc2 + leaky_relu (dropout: identity)

    h = jnp.dot(h.astype(jnp.bfloat16), w3_ref[...],
                preferred_element_type=jnp.float32) + b3_ref[...]
    h = _leaky_relu(h)                      # fc3 + leaky_relu (dropout: identity)

    # fc4: contract w4^T (out_dim, H3) against h (TB, H3) -> (out_dim, TB).
    # Batch lands on the lane axis => lane-dense logits store (instead of a
    # 1/128-filled (TB, 1) block of masked vst.msk).
    out = jax.lax.dot_general(
        w4t_ref[...], h.astype(jnp.bfloat16),
        dimension_numbers=(((1,), (1,)), ((), ())),
        preferred_element_type=jnp.float32) + b4t_ref[...]
    o_ref[...] = out.astype(o_ref.dtype)


def discriminator_forward(x, params):
    """Forward pass matching Discriminator.forward (eval mode).

    x: anything reshapable to (-1, 784); streamed in its own dtype.
    params: dict with w{1..4} of shape (in_features, out_features) and
            b{1..4} of shape (1, out_features).
    """
    x2d = x.reshape(-1, 28 * 28)           # natural layout & dtype: no pad, no cast
    B, K = x2d.shape
    h1 = params["w1"].shape[1]
    h2 = params["w2"].shape[1]
    h3 = params["w3"].shape[1]
    out_dim = params["w4"].shape[1]

    # --- batch tiling --------------------------------------------------------
    TB_MAX = 2048                           # 6.4 MB f32 / 3.2 MB bf16 per x tile
    if B <= 256:
        TB = B                              # single full-extent tile
    else:
        # Keep >=2 grid steps so ("parallel",) shards across both v7x TCs,
        # tiles a multiple of 256 to fill MXU rows / satisfy (8,128) layout.
        TB = min(TB_MAX, max(256, _round_up(pl.cdiv(B, 2), 256)))
    grid = (pl.cdiv(B, TB),)                # ragged last tile handled by Pallas

    # bf16 matmul operands (tiny, VMEM-resident); biases stay f32.
    w1 = params["w1"].astype(jnp.bfloat16)             # (784, h1) -- no K padding
    w2 = params["w2"].astype(jnp.bfloat16)
    w3 = params["w3"].astype(jnp.bfloat16)
    w4t = params["w4"].T.astype(jnp.bfloat16)           # (out_dim, h3)
    b1 = params["b1"].astype(jnp.float32)
    b2 = params["b2"].astype(jnp.float32)
    b3 = params["b3"].astype(jnp.float32)
    b4t = params["b4"].T.astype(jnp.float32)             # (out_dim, 1)
    weights = (w1, b1, w2, b2, w3, b3, w4t, b4t)

    x_map = lambda i: (i, 0)
    const_map = lambda i: (0, 0)            # weights resident across grid steps
    in_specs = [pl.BlockSpec((TB, K), x_map)] + [
        pl.BlockSpec(w.shape, const_map) for w in weights
    ]
    # Lane-dense output: logits live along lanes as (out_dim, B).
    out_specs = pl.BlockSpec((out_dim, TB), lambda i: (0, i))

    # Explicit scoped-VMEM limit: double-buffered x/out tiles plus slack for the
    # in-kernel bf16 copy of x, f32 intermediates and the resident weights.
    vmem_needed = 2 * TB * K * x2d.dtype.itemsize + 2 * out_dim * TB * 4
    vmem_limit = int(min(48 << 20, max(32 << 20, vmem_needed + (16 << 20))))

    weight_bytes = sum(int(w.size) * w.dtype.itemsize for w in weights)
    cost = pl.CostEstimate(
        flops=2 * B * (K * h1 + h1 * h2 + h2 * h3 + h3 * out_dim),
        transcendentals=0,
        bytes_accessed=int(B * K * x2d.dtype.itemsize + B * out_dim * 4
                           + weight_bytes))

    out_t = pl.pallas_call(
        discriminator_kernel,
        out_shape=jax.ShapeDtypeStruct((out_dim, B), jnp.float32),
        grid=grid,
        in_specs=in_specs,
        out_specs=out_specs,
        compiler_params=pltpu.CompilerParams(
            dimension_semantics=("parallel",),
            vmem_limit_bytes=vmem_limit),
        cost_estimate=cost,
    )(x2d, *weights)

    return out_t.T                          # (B, out_dim); free reshape for out_dim==1


def init_params(key, input_size=784, hidden_dim=32, output_size=1):
    """Deterministic init mimicking nn.Linear default (U[-1/sqrt(in), 1/sqrt(in)])."""
    dims = [
        (input_size, hidden_dim * 4),       # fc1
        (hidden_dim * 4, hidden_dim * 2),   # fc2
        (hidden_dim * 2, hidden_dim),       # fc3
        (hidden_dim, output_size),          # fc4
    ]
    params = {}
    for i, (fan_in, fan_out) in enumerate(dims, start=1):
        key, kw, kb = jax.random.split(key, 3)
        bound = 1.0 / (fan_in ** 0.5)
        params[f"w{i}"] = jax.random.uniform(
            kw, (fan_in, fan_out), jnp.float32, -bound, bound)
        params[f"b{i}"] = jax.random.uniform(
            kb, (1, fan_out), jnp.float32, -bound, bound)
    return params


def ref_forward(x, p):
    """Pure-JAX f32 reference (PyTorch eval-mode semantics)."""
    h = x.reshape(-1, 28 * 28)
    h = jax.nn.leaky_relu(h @ p["w1"] + p["b1"], negative_slope=0.2)
    h = jax.nn.leaky_relu(h @ p["w2"] + p["b2"], negative_slope=0.2)
    h = jax.nn.leaky_relu(h @ p["w3"] + p["b3"], negative_slope=0.2)
    return h @ p["w4"] + p["b4"]


if __name__ == "__main__":
    key = jax.random.PRNGKey(0)
    k_x, k_x2, k_p = jax.random.split(key, 3)

    params = init_params(k_p, input_size=28 * 28, hidden_dim=32, output_size=1)

    # Small deterministic input: batch=2, NCHW MNIST-shaped image (single-tile path).
    x = jax.random.normal(k_x, (2, 1, 28, 28), jnp.float32)
    out = discriminator_forward(x, params)
    jax.block_until_ready(out)
    ref = ref_forward(x, params)
    assert out.shape == ref.shape == (2, 1), out.shape
    # bf16 matmul operands vs f32 reference -> loosened tolerance.
    assert jnp.allclose(out, ref, atol=5e-2, rtol=5e-2), (
        float(jnp.max(jnp.abs(out - ref))))

    # Multi-step grid (2 "parallel" steps) + ragged last tile path.
    xb = jax.random.normal(k_x2, (300, 1, 28, 28), jnp.float32)
    outb = discriminator_forward(xb, params)
    jax.block_until_ready(outb)
    refb = ref_forward(xb, params)
    assert outb.shape == refb.shape == (300, 1), outb.shape
    assert jnp.allclose(outb, refb, atol=5e-2, rtol=5e-2), (
        float(jnp.max(jnp.abs(outb - refb))))

    print("KERNEL_OK")
</pallas_src>

<mosaic_0001>
module attributes {stable_mosaic.version = 11 : i64} {
  func.func @discriminator_kernel(%arg0: i32, %arg1: memref<2x784xf32, #tpu.memory_space<vmem>>, %arg2: memref<784x128xbf16, #tpu.memory_space<vmem>>, %arg3: memref<1x128xf32, #tpu.memory_space<vmem>>, %arg4: memref<128x64xbf16, #tpu.memory_space<vmem>>, %arg5: memref<1x64xf32, #tpu.memory_space<vmem>>, %arg6: memref<64x32xbf16, #tpu.memory_space<vmem>>, %arg7: memref<1x32xf32, #tpu.memory_space<vmem>>, %arg8: memref<1x32xbf16, #tpu.memory_space<vmem>>, %arg9: memref<1x1xf32, #tpu.memory_space<vmem>>, %arg10: memref<1x2xf32, #tpu.memory_space<vmem>>) attributes {dimension_semantics = [#tpu.dimension_semantics<parallel>], iteration_bounds = array<i64: 1>, scalar_prefetch = 0 : i64, scratch_operands = 0 : i64, tpu.core_type = #tpu.core_type<tc>, window_params = [{transform_indices = @transform_0, window_bounds = array<i64: 2, 784>}, {pipeline_mode = #tpu.pipeline_mode<synchronous>, transform_indices = @transform_1, window_bounds = array<i64: 784, 128>}, {pipeline_mode = #tpu.pipeline_mode<synchronous>, transform_indices = @transform_2, window_bounds = array<i64: 1, 128>}, {pipeline_mode = #tpu.pipeline_mode<synchronous>, transform_indices = @transform_3, window_bounds = array<i64: 128, 64>}, {pipeline_mode = #tpu.pipeline_mode<synchronous>, transform_indices = @transform_4, window_bounds = array<i64: 1, 64>}, {pipeline_mode = #tpu.pipeline_mode<synchronous>, transform_indices = @transform_5, window_bounds = array<i64: 64, 32>}, {pipeline_mode = #tpu.pipeline_mode<synchronous>, transform_indices = @transform_6, window_bounds = array<i64: 1, 32>}, {pipeline_mode = #tpu.pipeline_mode<synchronous>, transform_indices = @transform_7, window_bounds = array<i64: 1, 32>}, {pipeline_mode = #tpu.pipeline_mode<synchronous>, transform_indices = @transform_8, window_bounds = array<i64: 1, 1>}, {transform_indices = @transform_9, window_bounds = array<i64: 1, 2>}]} {
    %c0 = arith.constant 0 : index
    %c0_0 = arith.constant 0 : index
    %0 = vector.load %arg1[%c0, %c0_0] : memref<2x784xf32, #tpu.memory_space<vmem>>, vector<2x784xf32>
    %1 = arith.truncf %0 : vector<2x784xf32> to vector<2x784xbf16>
    %c0_1 = arith.constant 0 : index
    %c0_2 = arith.constant 0 : index
    %2 = vector.load %arg2[%c0_1, %c0_2] : memref<784x128xbf16, #tpu.memory_space<vmem>>, vector<784x128xbf16>
    %cst = arith.constant dense<0.000000e+00> : vector<2x128xf32>
    %3 = tpu.matmul %1, %2, %cst {dimension_numbers = #tpu.dot_dimension_numbers<[1], [0], [0], [1], [0, 0, 1, 1], [], []>} : vector<2x784xbf16>, vector<784x128xbf16>, vector<2x128xf32> -> vector<2x128xf32>
    %c0_3 = arith.constant 0 : index
    %c0_4 = arith.constant 0 : index
    %4 = vector.load %arg3[%c0_3, %c0_4] : memref<1x128xf32, #tpu.memory_space<vmem>>, vector<1x128xf32>
    %5 = vector.broadcast %4 : vector<1x128xf32> to vector<2x128xf32>
    %6 = arith.addf %3, %5 : vector<2x128xf32>
    %cst_5 = arith.constant 0.000000e+00 : f32
    %7 = vector.broadcast %cst_5 : f32 to vector<2x128xf32>
    %8 = arith.cmpf ogt, %6, %7 : vector<2x128xf32>
    %cst_6 = arith.constant 2.000000e-01 : f32
    %9 = vector.broadcast %cst_6 : f32 to vector<2x128xf32>
    %10 = arith.mulf %9, %6 : vector<2x128xf32>
    %11 = arith.select %8, %6, %10 : vector<2x128xi1>, vector<2x128xf32>
    %12 = arith.truncf %11 : vector<2x128xf32> to vector<2x128xbf16>
    %c0_7 = arith.constant 0 : index
    %c0_8 = arith.constant 0 : index
    %13 = vector.load %arg4[%c0_7, %c0_8] : memref<128x64xbf16, #tpu.memory_space<vmem>>, vector<128x64xbf16>
    %cst_9 = arith.constant dense<0.000000e+00> : vector<2x64xf32>
    %14 = tpu.matmul %12, %13, %cst_9 {dimension_numbers = #tpu.dot_dimension_numbers<[1], [0], [0], [1], [0, 0, 1, 1], [], []>} : vector<2x128xbf16>, vector<128x64xbf16>, vector<2x64xf32> -> vector<2x64xf32>
    %c0_10 = arith.constant 0 : index
    %c0_11 = arith.constant 0 : index
    %15 = vector.load %arg5[%c0_10, %c0_11] : memref<1x64xf32, #tpu.memory_space<vmem>>, vector<1x64xf32>
    %16 = vector.broadcast %15 : vector<1x64xf32> to vector<2x64xf32>
    %17 = arith.addf %14, %16 : vector<2x64xf32>
    %cst_12 = arith.constant 0.000000e+00 : f32
    %18 = vector.broadcast %cst_12 : f32 to vector<2x64xf32>
    %19 = arith.cmpf ogt, %17, %18 : vector<2x64xf32>
    %cst_13 = arith.constant 2.000000e-01 : f32
    %20 = vector.broadcast %cst_13 : f32 to vector<2x64xf32>
    %21 = arith.mulf %20, %17 : vector<2x64xf32>
    %22 = arith.select %19, %17, %21 : vector<2x64xi1>, vector<2x64xf32>
    %23 = arith.truncf %22 : vector<2x64xf32> to vector<2x64xbf16>
    %c0_14 = arith.constant 0 : index
    %c0_15 = arith.constant 0 : index
    %24 = vector.load %arg6[%c0_14, %c0_15] : memref<64x32xbf16, #tpu.memory_space<vmem>>, vector<64x32xbf16>
    %cst_16 = arith.constant dense<0.000000e+00> : vector<2x32xf32>
    %25 = tpu.matmul %23, %24, %cst_16 {dimension_numbers = #tpu.dot_dimension_numbers<[1], [0], [0], [1], [0, 0, 1, 1], [], []>} : vector<2x64xbf16>, vector<64x32xbf16>, vector<2x32xf32> -> vector<2x32xf32>
    %c0_17 = arith.constant 0 : index
    %c0_18 = arith.constant 0 : index
    %26 = vector.load %arg7[%c0_17, %c0_18] : memref<1x32xf32, #tpu.memory_space<vmem>>, vector<1x32xf32>
    %27 = vector.broadcast %26 : vector<1x32xf32> to vector<2x32xf32>
    %28 = arith.addf %25, %27 : vector<2x32xf32>
    %cst_19 = arith.constant 0.000000e+00 : f32
    %29 = vector.broadcast %cst_19 : f32 to vector<2x32xf32>
    %30 = arith.cmpf ogt, %28, %29 : vector<2x32xf32>
    %cst_20 = arith.constant 2.000000e-01 : f32
    %31 = vector.broadcast %cst_20 : f32 to vector<2x32xf32>
    %32 = arith.mulf %31, %28 : vector<2x32xf32>
    %33 = arith.select %30, %28, %32 : vector<2x32xi1>, vector<2x32xf32>
    %c0_21 = arith.constant 0 : index
    %c0_22 = arith.constant 0 : index
    %34 = vector.load %arg8[%c0_21, %c0_22] : memref<1x32xbf16, #tpu.memory_space<vmem>>, vector<1x32xbf16>
    %35 = arith.truncf %33 : vector<2x32xf32> to vector<2x32xbf16>
    %cst_23 = arith.constant dense<0.000000e+00> : vector<1x2xf32>
    %36 = tpu.matmul %34, %35, %cst_23 {dimension_numbers = #tpu.dot_dimension_numbers<[1], [1], [0], [0], [0, 0, 1, 0], [], []>} : vector<1x32xbf16>, vector<2x32xbf16>, vector<1x2xf32> -> vector<1x2xf32>
    %c0_24 = arith.constant 0 : index
    %c0_25 = arith.constant 0 : index
    %37 = vector.load %arg9[%c0_24, %c0_25] : memref<1x1xf32, #tpu.memory_space<vmem>>, vector<1x1xf32>
    %38 = vector.broadcast %37 : vector<1x1xf32> to vector<1x2xf32>
    %39 = arith.addf %36, %38 : vector<1x2xf32>
    %c0_26 = arith.constant 0 : index
    %c0_27 = arith.constant 0 : index
    %40 = vector.load %arg10[%c0_26, %c0_27] : memref<1x2xf32, #tpu.memory_space<vmem>>, vector<1x2xf32>
    tpu.vector_store %arg10[%c0_26, %c0_27], %39 {strides = array<i32>} : memref<1x2xf32, #tpu.memory_space<vmem>>, vector<1x2xf32>,
    return
  }
  func.func @transform_0(%arg0: i32) -> (i32, i32) {
    %c0_i32 = arith.constant 0 : i32
    %c0_i32_0 = arith.constant 0 : i32
    return %arg0, %c0_i32 : i32, i32
  }
  func.func @transform_1(%arg0: i32) -> (i32, i32) {
    %c0_i32 = arith.constant 0 : i32
    %c0_i32_0 = arith.constant 0 : i32
    %c0_i32_1 = arith.constant 0 : i32
    return %c0_i32, %c0_i32_0 : i32, i32
  }
  func.func @transform_2(%arg0: i32) -> (i32, i32) {
    %c0_i32 = arith.constant 0 : i32
    %c0_i32_0 = arith.constant 0 : i32
    %c0_i32_1 = arith.constant 0 : i32
    return %c0_i32, %c0_i32_0 : i32, i32
  }
  func.func @transform_3(%arg0: i32) -> (i32, i32) {
    %c0_i32 = arith.constant 0 : i32
    %c0_i32_0 = arith.constant 0 : i32
    %c0_i32_1 = arith.constant 0 : i32
    return %c0_i32, %c0_i32_0 : i32, i32
  }
  func.func @transform_4(%arg0: i32) -> (i32, i32) {
    %c0_i32 = arith.constant 0 : i32
    %c0_i32_0 = arith.constant 0 : i32
    %c0_i32_1 = arith.constant 0 : i32
    return %c0_i32, %c0_i32_0 : i32, i32
  }
  func.func @transform_5(%arg0: i32) -> (i32, i32) {
    %c0_i32 = arith.constant 0 : i32
    %c0_i32_0 = arith.constant 0 : i32
    %c0_i32_1 = arith.constant 0 : i32
    return %c0_i32, %c0_i32_0 : i32, i32
  }
  func.func @transform_6(%arg0: i32) -> (i32, i32) {
    %c0_i32 = arith.constant 0 : i32
    %c0_i32_0 = arith.constant 0 : i32
    %c0_i32_1 = arith.constant 0 : i32
    return %c0_i32, %c0_i32_0 : i32, i32
  }
  func.func @transform_7(%arg0: i32) -> (i32, i32) {
    %c0_i32 = arith.constant 0 : i32
    %c0_i32_0 = arith.constant 0 : i32
    %c0_i32_1 = arith.constant 0 : i32
    return %c0_i32, %c0_i32_0 : i32, i32
  }
  func.func @transform_8(%arg0: i32) -> (i32, i32) {
    %c0_i32 = arith.constant 0 : i32
    %c0_i32_0 = arith.constant 0 : i32
    %c0_i32_1 = arith.constant 0 : i32
    return %c0_i32, %c0_i32_0 : i32, i32
  }
  func.func @transform_9(%arg0: i32) -> (i32, i32) {
    %c0_i32 = arith.constant 0 : i32
    %c0_i32_0 = arith.constant 0 : i32
    return %c0_i32, %arg0 : i32, i32
  }
}

</mosaic_0001>

<llo_original>
// kernel: tpu_custom_call.1
$region0: #{tpu_custom_call.1}
  #allocation0 [shape = 'u32[]', space=smem, size = 0x4, offset = 0x4, fixed_abs, tag = 'smem constant byte address 0x4 - core index']
  #allocation1 [shape = 'u32[72,128]{1,0:T(1,128)}', space=vmem, size = 0x9000, scoped, tag = 'internal scratch']
  #allocation2 [shape = 'f32[1,1]{1,0:T(1,128)S(1)}', space=vmem, size = 0x200, scoped, tag = 'scoped memory for tpu_custom_call.1']
  %s0 = inlined_call_operand.vmem [shape: f32[2,784], index: 0, kind: input, shape index: {}]
  %s1 = inlined_call_operand.hbm [shape: bf16[784,128], index: 1, kind: input, shape index: {}]
  %s2 = inlined_call_operand.vmem [shape: f32[1,128], index: 2, kind: input, shape index: {}]
  %s3 = inlined_call_operand.vmem [shape: bf16[128,64], index: 3, kind: input, shape index: {}]
  %s4 = inlined_call_operand.vmem [shape: f32[1,64], index: 4, kind: input, shape index: {}]
  %s5 = inlined_call_operand.vmem [shape: bf16[64,32], index: 5, kind: input, shape index: {}]
  %s6 = inlined_call_operand.vmem [shape: f32[1,32], index: 6, kind: input, shape index: {}]
  %s7 = inlined_call_operand.vmem [shape: bf16[1,32], index: 7, kind: input, shape index: {}]
  %s8 = inlined_call_operand.<no memory space> [shape: f32[1,1], index: 8, kind: input, shape index: {}]
  %s9 = inlined_call_operand.hbm [shape: f32[1,2], index: 9, kind: output, shape index: {}]
  %s10 = sld [smem:[#allocation0]]
  $region50: #{tpu_custom_call.1} parent=0
    _
  %s12 = ssub.s32 1, %s10
  %s13 = scalar_select 0, %s12, %s10
  %v14 = vstv %s8
  %15 = vst [vmem:[#allocation2] sm:$0x1] %v14
  $region1: #{tpu_custom_call.1} parent=0
    #allocation3 [shape = 'u8[200704]{0}', space=vmem, size = 0x31000, scoped, tag = 'input window, operand 1, single buffered']
    #allocation4 [shape = 's32[1]{0}', space=sflag, size = 0x4, scoped, tag = 'scoped memory for tpu_custom_call.1']
    #allocation5 [shape = 's32[1]{0}', space=sflag, size = 0x4, scoped, tag = 'scoped memory for tpu_custom_call.1']
    #allocation6 [shape = 'u8[512]{0}', space=vmem, size = 0x400, scoped, tag = 'output window, operand 0, single buffered']
    %16 = vsyncpa [#allocation4], 0
    %17 = vsyncpa [#allocation5], 0
    // Predicated region
    $region2: #{tpu_custom_call.1} parent=1 // pred_check
      _
    $region3: #{tpu_custom_call.1} parent=1 // pred_check_branch
      %19 = sbr.rel (0) target = $region5
    $region4: #{tpu_custom_call.1} parent=1 // pred_region
      _
    $region5: #{tpu_custom_call.1} parent=1 // pred_fallthru
      _
    // Predicated region
    $region6: #{tpu_custom_call.1} parent=1 // pred_check
      _
    $region7: #{tpu_custom_call.1} parent=1 // pred_check_branch
      %21 = sbr.rel (0) target = $region9
    $region8: #{tpu_custom_call.1} parent=1 // pred_region
      %23 = vsyncadd [#allocation4], 0
      %s24 = sshll.u32 %s1, 4
      %s25 = int_to_ptr.hbm [resolvable:$true] %s24
      %s26 = sshll.u32 [#allocation3], 4
      %s27 = int_to_ptr.vmem [resolvable:$true] %s26
      %32 = dma.hbm_to_vmem [thread:$0]  %s25, 6272, %s27, [#allocation4], 64, 64, 4
    $region9: #{tpu_custom_call.1} parent=1 // pred_fallthru
      _
    // Predicated region
    $region10: #{tpu_custom_call.1} parent=1 // pred_check
      _
    $region11: #{tpu_custom_call.1} parent=1 // pred_check_branch
      %34 = sbr.rel (0) target = $region13
    $region12: #{tpu_custom_call.1} parent=1 // pred_region
      _
    $region13: #{tpu_custom_call.1} parent=1 // pred_fallthru
      _
    // Predicated region
    $region14: #{tpu_custom_call.1} parent=1 // pred_check
      _
    $region15: #{tpu_custom_call.1} parent=1 // pred_check_branch
      %36 = sbr.rel (0) target = $region17
    $region16: #{tpu_custom_call.1} parent=1 // pred_region
      _
    $region17: #{tpu_custom_call.1} parent=1 // pred_fallthru
      _
    // Predicated region
    $region18: #{tpu_custom_call.1} parent=1 // pred_check
      _
    $region19: #{tpu_custom_call.1} parent=1 // pred_check_branch
      %38 = sbr.rel (0) target = $region21
    $region20: #{tpu_custom_call.1} parent=1 // pred_region
      _
    $region21: #{tpu_custom_call.1} parent=1 // pred_fallthru
      _
    // Predicated region
    $region22: #{tpu_custom_call.1} parent=1 // pred_check
      _
    $region23: #{tpu_custom_call.1} parent=1 // pred_check_branch
      %40 = sbr.rel (0) target = $region25
    $region24: #{tpu_custom_call.1} parent=1 // pred_region
      _
    $region25: #{tpu_custom_call.1} parent=1 // pred_fallthru
      _
    // Predicated region
    $region26: #{tpu_custom_call.1} parent=1 // pred_check
      _
    $region27: #{tpu_custom_call.1} parent=1 // pred_check_branch
      %42 = sbr.rel (0) target = $region29
    $region28: #{tpu_custom_call.1} parent=1 // pred_region
      _
    $region29: #{tpu_custom_call.1} parent=1 // pred_fallthru
      _
    // Predicated region
    $region30: #{tpu_custom_call.1} parent=1 // pred_check
      _
    $region31: #{tpu_custom_call.1} parent=1 // pred_check_branch
      %44 = sbr.rel (0) target = $region33
    $region32: #{tpu_custom_call.1} parent=1 // pred_region
      _
    $region33: #{tpu_custom_call.1} parent=1 // pred_fallthru
      _
    // Predicated region
    $region34: #{tpu_custom_call.1} parent=1 // pred_check
      _
    $region35: #{tpu_custom_call.1} parent=1 // pred_check_branch
      %46 = sbr.rel (0) target = $region37
    $region36: #{tpu_custom_call.1} parent=1 // pred_region
      _
    $region37: #{tpu_custom_call.1} parent=1 // pred_fallthru
      _
    // Predicated region
    $region38: #{tpu_custom_call.1} parent=1 // pred_check
      _
    $region39: #{tpu_custom_call.1} parent=1 // pred_check_branch
      %48 = sbr.rel (0) target = $region41
    $region40: #{tpu_custom_call.1} parent=1 // pred_region
      %50 = dma.done [#allocation4], 6272
    $region41: #{tpu_custom_call.1} parent=1 // pred_fallthru
      _
    %v52 = vld [vmem:[%s0] sm:$0xff]
    %v53 = vld [vmem:[%s0 + $0x8] sm:$0x3f]
    %56 = vst [vmem:[#allocation1] ss:$4 sm:$0xff] %v52
    %s57 = scalar_lea.vmem [#allocation1], 32
    %58 = vst [vmem:[%s57] ss:$4 sm:$0xff] %v53
    %v59 = vld.sshfl [vmem:[#allocation1] sm:$0xff pattern:$0x73625140]
    %v60 = vld.sshfl [vmem:[#allocation1 + $0x8] sm:$0xff pattern:$0x73625140]
    %v61 = vld.sshfl [vmem:[#allocation1 + $0x10] sm:$0xff pattern:$0x73625140]
    %v62 = vld.sshfl [vmem:[#allocation1 + $0x18] sm:$0xff pattern:$0x73625140]
    %v63 = vld.sshfl [vmem:[#allocation1 + $0x20] sm:$0xff pattern:$0x73625140]
    %v64 = vld.sshfl [vmem:[#allocation1 + $0x28] sm:$0xff pattern:$0x73625140]
    %v65 = vld.sshfl [vmem:[#allocation1 + $0x30] sm:$0xff pattern:$0x73625140]
    %v73 = vpack.c.bf16 %v59, %v59
    %v74 = vpack.c.bf16 %v60, %v60
    %v75 = vpack.c.bf16 %v61, %v61
    %v76 = vpack.c.bf16 %v62, %v62
    %v77 = vpack.c.bf16 %v63, %v63
    %v78 = vpack.c.bf16 %v64, %v64
    %v79 = vpack.c.bf16 %v65, %v65
    %v80 = vld [vmem:[#allocation3] sm:$0xf]
    %v81 = vld [vmem:[#allocation3 + $0x4] sm:$0xf]
    %v82 = vld [vmem:[#allocation3 + $0x8] sm:$0xf]
    %v83 = vld [vmem:[#allocation3 + $0xc] sm:$0xf]
    %v84 = vld [vmem:[#allocation3 + $0x10] sm:$0xf]
    %v85 = vld [vmem:[#allocation3 + $0x14] sm:$0xf]
    %v86 = vld [vmem:[#allocation3 + $0x18] sm:$0xf]
    %v87 = vld [vmem:[#allocation3 + $0x1c] sm:$0xf]
    %v88 = vld [vmem:[#allocation3 + $0x20] sm:$0xf]
    %v89 = vld [vmem:[#allocation3 + $0x24] sm:$0xf]
    %v90 = vld [vmem:[#allocation3 + $0x28] sm:$0xf]
    %v91 = vld [vmem:[#allocation3 + $0x2c] sm:$0xf]
    %v92 = vld [vmem:[#allocation3 + $0x30] sm:$0xf]
    %v93 = vld [vmem:[#allocation3 + $0x34] sm:$0xf]
    %v94 = vld [vmem:[#allocation3 + $0x38] sm:$0xf]
    %v95 = vld [vmem:[#allocation3 + $0x3c] sm:$0xf]
    %v96 = vld [vmem:[#allocation3 + $0x40] sm:$0xf]
    %v97 = vld [vmem:[#allocation3 + $0x44] sm:$0xf]
    %v98 = vld [vmem:[#allocation3 + $0x48] sm:$0xf]
    %v99 = vld [vmem:[#allocation3 + $0x4c] sm:$0xf]
    %v100 = vld [vmem:[#allocation3 + $0x50] sm:$0xf]
    %v101 = vld [vmem:[#allocation3 + $0x54] sm:$0xf]
    %v102 = vld [vmem:[#allocation3 + $0x58] sm:$0xf]
    %v103 = vld [vmem:[#allocation3 + $0x5c] sm:$0xf]
    %v104 = vld [vmem:[#allocation3 + $0x60] sm:$0xf]
    %v105 = vld [vmem:[#allocation3 + $0x64] sm:$0xf]
    %v106 = vld [vmem:[#allocation3 + $0x68] sm:$0xf]
    %v107 = vld [vmem:[#allocation3 + $0x6c] sm:$0xf]
    %v108 = vld [vmem:[#allocation3 + $0x70] sm:$0xf]
    %v109 = vld [vmem:[#allocation3 + $0x74] sm:$0xf]
    %v110 = vld [vmem:[#allocation3 + $0x78] sm:$0xf]
    %v111 = vld [vmem:[#allocation3 + $0x7c] sm:$0xf]
    %v112 = vld [vmem:[#allocation3 + $0x80] sm:$0xf]
    %v113 = vld [vmem:[#allocation3 + $0x84] sm:$0xf]
    %v114 = vld [vmem:[#allocation3 + $0x88] sm:$0xf]
    %v115 = vld [vmem:[#allocation3 + $0x8c] sm:$0xf]
    %v116 = vld [vmem:[#allocation3 + $0x90] sm:$0xf]
    %v117 = vld [vmem:[#allocation3 + $0x94] sm:$0xf]
    %v118 = vld [vmem:[#allocation3 + $0x98] sm:$0xf]
    %v119 = vld [vmem:[#allocation3 + $0x9c] sm:$0xf]
    %v120 = vld [vmem:[#allocation3 + $0xa0] sm:$0xf]
    %v121 = vld [vmem:[#allocation3 + $0xa4] sm:$0xf]
    %v122 = vld [vmem:[#allocation3 + $0xa8] sm:$0xf]
    %v123 = vld [vmem:[#allocation3 + $0xac] sm:$0xf]
    %v124 = vld [vmem:[#allocation3 + $0xb0] sm:$0xf]
    %v125 = vld [vmem:[#allocation3 + $0xb4] sm:$0xf]
    %v126 = vld [vmem:[#allocation3 + $0xb8] sm:$0xf]
    %v127 = vld [vmem:[#allocation3 + $0xbc] sm:$0xf]
    %v128 = vld [vmem:[#allocation3 + $0xc0] sm:$0xf]
    %v129 = vld [vmem:[#allocation3 + $0xc4] sm:$0xf]
    %v130 = vld [vmem:[#allocation3 + $0xc8] sm:$0xf]
    %v131 = vld [vmem:[#allocation3 + $0xcc] sm:$0xf]
    %v132 = vld [vmem:[#allocation3 + $0xd0] sm:$0xf]
    %v133 = vld [vmem:[#allocation3 + $0xd4] sm:$0xf]
    %v134 = vld [vmem:[#allocation3 + $0xd8] sm:$0xf]
    %v135 = vld [vmem:[#allocation3 + $0xdc] sm:$0xf]
    %v136 = vld [vmem:[#allocation3 + $0xe0] sm:$0xf]
    %v137 = vld [vmem:[#allocation3 + $0xe4] sm:$0xf]
    %v138 = vld [vmem:[#allocation3 + $0xe8] sm:$0xf]
    %v139 = vld [vmem:[#allocation3 + $0xec] sm:$0xf]
    %v140 = vld [vmem:[#allocation3 + $0xf0] sm:$0xf]
    %v141 = vld [vmem:[#allocation3 + $0xf4] sm:$0xf]
    %v142 = vld [vmem:[#allocation3 + $0xf8] sm:$0xf]
    %v143 = vld [vmem:[#allocation3 + $0xfc] sm:$0xf]
    %v144 = vld [vmem:[#allocation3 + $0x100] sm:$0xf]
    %v145 = vld [vmem:[#allocation3 + $0x104] sm:$0xf]
    %v146 = vld [vmem:[#allocation3 + $0x108] sm:$0xf]
    %v147 = vld [vmem:[#allocation3 + $0x10c] sm:$0xf]
    %v148 = vld [vmem:[#allocation3 + $0x110] sm:$0xf]
    %v149 = vld [vmem:[#allocation3 + $0x114] sm:$0xf]
    %v150 = vld [vmem:[#allocation3 + $0x118] sm:$0xf]
    %v151 = vld [vmem:[#allocation3 + $0x11c] sm:$0xf]
    %v152 = vld [vmem:[#allocation3 + $0x120] sm:$0xf]
    %v153 = vld [vmem:[#allocation3 + $0x124] sm:$0xf]
    %v154 = vld [vmem:[#allocation3 + $0x128] sm:$0xf]
    %v155 = vld [vmem:[#allocation3 + $0x12c] sm:$0xf]
    %v156 = vld [vmem:[#allocation3 + $0x130] sm:$0xf]
    %v157 = vld [vmem:[#allocation3 + $0x134] sm:$0xf]
    %v158 = vld [vmem:[#allocation3 + $0x138] sm:$0xf]
    %v159 = vld [vmem:[#allocation3 + $0x13c] sm:$0xf]
    %v160 = vld [vmem:[#allocation3 + $0x140] sm:$0xf]
    %v161 = vld [vmem:[#allocation3 + $0x144] sm:$0xf]
    %v162 = vld [vmem:[#allocation3 + $0x148] sm:$0xf]
    %v163 = vld [vmem:[#allocation3 + $0x14c] sm:$0xf]
    %v164 = vld [vmem:[#allocation3 + $0x150] sm:$0xf]
    %v165 = vld [vmem:[#allocation3 + $0x154] sm:$0xf]
    %v166 = vld [vmem:[#allocation3 + $0x158] sm:$0xf]
    %v167 = vld [vmem:[#allocation3 + $0x15c] sm:$0xf]
    %v168 = vld [vmem:[#allocation3 + $0x160] sm:$0xf]
    %v169 = vld [vmem:[#allocation3 + $0x164] sm:$0xf]
    %v170 = vld [vmem:[#allocation3 + $0x168] sm:$0xf]
    %v171 = vld [vmem:[#allocation3 + $0x16c] sm:$0xf]
    %v172 = vld [vmem:[#allocation3 + $0x170] sm:$0xf]
    %v173 = vld [vmem:[#allocation3 + $0x174] sm:$0xf]
    %v174 = vld [vmem:[#allocation3 + $0x178] sm:$0xf]
    %v175 = vld [vmem:[#allocation3 + $0x17c] sm:$0xf]
    %v176 = vld [vmem:[#allocation3 + $0x180] sm:$0xf]
    %v177 = vld [vmem:[#allocation3 + $0x184] sm:$0xf]
    %v178 = vld [vmem:[%s2] sm:$0x1]
    %v180 = vperm.slane %v178, 0
    %v280 = vunpack.c.l.b16 %v80
    %v281 = vunpack.c.l.b16 %v81
    %v282 = vunpack.c.l.b16 %v82
    %v283 = vunpack.c.l.b16 %v83
    %v284 = vunpack.c.l.b16 %v84
    %v285 = vunpack.c.l.b16 %v85
    %v286 = vunpack.c.l.b16 %v86
    %v287 = vunpack.c.l.b16 %v87
    %v288 = vunpack.c.l.b16 %v88
    %v289 = vunpack.c.l.b16 %v89
    %v290 = vunpack.c.l.b16 %v90
    %v291 = vunpack.c.l.b16 %v91
    %v292 = vunpack.c.l.b16 %v92
    %v293 = vunpack.c.l.b16 %v93
    %v294 = vunpack.c.l.b16 %v94
    %v295 = vunpack.c.l.b16 %v95
    %v296 = vunpack.c.l.b16 %v96
    %v297 = vunpack.c.l.b16 %v97
    %v298 = vunpack.c.l.b16 %v98
    %v299 = vunpack.c.l.b16 %v99
    %v300 = vunpack.c.l.b16 %v100
    %v301 = vunpack.c.l.b16 %v101
    %v302 = vunpack.c.l.b16 %v102
    %v303 = vunpack.c.l.b16 %v103
    %v304 = vunpack.c.l.b16 %v104
    %v305 = vunpack.c.l.b16 %v105
    %v306 = vunpack.c.l.b16 %v106
    %v307 = vunpack.c.l.b16 %v107
    %v308 = vunpack.c.l.b16 %v108
    %v309 = vunpack.c.l.b16 %v109
    %v310 = vunpack.c.l.b16 %v110
    %v311 = vunpack.c.l.b16 %v111
    %v312 = vunpack.c.l.b16 %v112
    %v313 = vunpack.c.l.b16 %v113
    %v314 = vunpack.c.l.b16 %v114
    %v315 = vunpack.c.l.b16 %v115
    %v316 = vunpack.c.l.b16 %v116
    %v317 = vunpack.c.l.b16 %v117
    %v318 = vunpack.c.l.b16 %v118
    %v319 = vunpack.c.l.b16 %v119
    %v320 = vunpack.c.l.b16 %v120
    %v321 = vunpack.c.l.b16 %v121
    %v322 = vunpack.c.l.b16 %v122
    %v323 = vunpack.c.l.b16 %v123
    %v324 = vunpack.c.l.b16 %v124
    %v325 = vunpack.c.l.b16 %v125
    %v326 = vunpack.c.l.b16 %v126
    %v327 = vunpack.c.l.b16 %v127
    %v328 = vunpack.c.l.b16 %v128
    %v329 = vunpack.c.l.b16 %v129
    %v330 = vunpack.c.l.b16 %v130
    %v331 = vunpack.c.l.b16 %v131
    %v332 = vunpack.c.l.b16 %v132
    %v333 = vunpack.c.l.b16 %v133
    %v334 = vunpack.c.l.b16 %v134
    %v335 = vunpack.c.l.b16 %v135
    %v336 = vunpack.c.l.b16 %v136
    %v337 = vunpack.c.l.b16 %v137
    %v338 = vunpack.c.l.b16 %v138
    %v339 = vunpack.c.l.b16 %v139
    %v340 = vunpack.c.l.b16 %v140
    %v341 = vunpack.c.l.b16 %v141
    %v342 = vunpack.c.l.b16 %v142
    %v343 = vunpack.c.l.b16 %v143
    %v344 = vunpack.c.l.b16 %v144
    %v345 = vunpack.c.l.b16 %v145
    %v346 = vunpack.c.l.b16 %v146
    %v347 = vunpack.c.l.b16 %v147
    %v348 = vunpack.c.l.b16 %v148
    %v349 = vunpack.c.l.b16 %v149
    %v350 = vunpack.c.l.b16 %v150
    %v351 = vunpack.c.l.b16 %v151
    %v352 = vunpack.c.l.b16 %v152
    %v353 = vunpack.c.l.b16 %v153
    %v354 = vunpack.c.l.b16 %v154
    %v355 = vunpack.c.l.b16 %v155
    %v356 = vunpack.c.l.b16 %v156
    %v357 = vunpack.c.l.b16 %v157
    %v358 = vunpack.c.l.b16 %v158
    %v359 = vunpack.c.l.b16 %v159
    %v360 = vunpack.c.l.b16 %v160
    %v361 = vunpack.c.l.b16 %v161
    %v362 = vunpack.c.l.b16 %v162
    %v363 = vunpack.c.l.b16 %v163
    %v364 = vunpack.c.l.b16 %v164
    %v365 = vunpack.c.l.b16 %v165
    %v366 = vunpack.c.l.b16 %v166
    %v367 = vunpack.c.l.b16 %v167
    %v368 = vunpack.c.l.b16 %v168
    %v369 = vunpack.c.l.b16 %v169
    %v370 = vunpack.c.l.b16 %v170
    %v371 = vunpack.c.l.b16 %v171
    %v372 = vunpack.c.l.b16 %v172
    %v373 = vunpack.c.l.b16 %v173
    %v374 = vunpack.c.l.b16 %v174
    %v375 = vunpack.c.l.b16 %v175
    %v376 = vunpack.c.l.b16 %v176
    %v377 = vunpack.c.l.b16 %v177
    %v378 = vpack.c.b16 %v281, %v280
    %v379 = vpack.c.b16 %v283, %v282
    %v380 = vpack.c.b16 %v285, %v284
    %v381 = vpack.c.b16 %v287, %v286
    %v382 = vpack.c.b16 %v289, %v288
    %v383 = vpack.c.b16 %v291, %v290
    %v384 = vpack.c.b16 %v293, %v292
    %v385 = vpack.c.b16 %v295, %v294
    %v386 = vpack.c.b16 %v297, %v296
    %v387 = vpack.c.b16 %v299, %v298
    %v388 = vpack.c.b16 %v301, %v300
    %v389 = vpack.c.b16 %v303, %v302
    %v390 = vpack.c.b16 %v305, %v304
    %v391 = vpack.c.b16 %v307, %v306
    %v392 = vpack.c.b16 %v309, %v308
    %v393 = vpack.c.b16 %v311, %v310
    %v394 = vpack.c.b16 %v313, %v312
    %v395 = vpack.c.b16 %v315, %v314
    %v396 = vpack.c.b16 %v317, %v316
    %v397 = vpack.c.b16 %v319, %v318
    %v398 = vpack.c.b16 %v321, %v320
    %v399 = vpack.c.b16 %v323, %v322
    %v400 = vpack.c.b16 %v325, %v324
    %v401 = vpack.c.b16 %v327, %v326
    %v402 = vpack.c.b16 %v329, %v328
    %v403 = vpack.c.b16 %v331, %v330
    %v404 = vpack.c.b16 %v333, %v332
    %v405 = vpack.c.b16 %v335, %v334
    %v406 = vpack.c.b16 %v337, %v336
    %v407 = vpack.c.b16 %v339, %v338
    %v408 = vpack.c.b16 %v341, %v340
    %v409 = vpack.c.b16 %v343, %v342
    %v410 = vpack.c.b16 %v345, %v344
    %v411 = vpack.c.b16 %v347, %v346
    %v412 = vpack.c.b16 %v349, %v348
    %v413 = vpack.c.b16 %v351, %v350
    %v414 = vpack.c.b16 %v353, %v352
    %v415 = vpack.c.b16 %v355, %v354
    %v416 = vpack.c.b16 %v357, %v356
    %v417 = vpack.c.b16 %v359, %v358
    %v418 = vpack.c.b16 %v361, %v360
    %v419 = vpack.c.b16 %v363, %v362
    %v420 = vpack.c.b16 %v365, %v364
    %v421 = vpack.c.b16 %v367, %v366
    %v422 = vpack.c.b16 %v369, %v368
    %v423 = vpack.c.b16 %v371, %v370
    %v424 = vpack.c.b16 %v373, %v372
    %v425 = vpack.c.b16 %v375, %v374
    %v426 = vpack.c.b16 %v377, %v376
    %vm476 = vcmask 130048
    %v478 = vsel %vm476, %v79, 0
    %480 = vmatpush.bf16.msra.mxu0 %v385
    %481 = vmatpush.bf16.msra.mxu0 %v384
    %482 = vmatpush.bf16.msra.mxu0 %v383
    %483 = vmatpush.bf16.msra.mxu0 %v382
    %484 = vmatpush.bf16.msra.mxu0 %v381
    %485 = vmatpush.bf16.msra.mxu0 %v380
    %486 = vmatpush.bf16.msra.mxu0 %v379
    %487 = vmatpush.bf16.msra.mxu0 %v378
    %488 = vmatmul.bf16.gmra.mxu0 %v73
    %v489 = vpop.f32.mrf.mxu0
    %v490 = vadd.f32 %v180, %v489
    %v491 = vpop.f32.mrf.mxu0
    %492 = vdwg.mxu0
    %493 = vmatpush.bf16.msra.mxu0 %v393
    %494 = vmatpush.bf16.msra.mxu0 %v392
    %495 = vmatpush.bf16.msra.mxu0 %v391
    %496 = vmatpush.bf16.msra.mxu0 %v390
    %497 = vmatpush.bf16.msra.mxu0 %v389
    %498 = vmatpush.bf16.msra.mxu0 %v388
    %499 = vmatpush.bf16.msra.mxu0 %v387
    %500 = vmatpush.bf16.msra.mxu0 %v386
    %501 = vmatmul.bf16.gmra.mxu0 %v74
    %v502 = vpop.f32.mrf.mxu0
    %v503 = vadd.f32 %v490, %v502
    %v504 = vpop.f32.mrf.mxu0
    %505 = vdwg.mxu0
    %506 = vmatpush.bf16.msra.mxu0 %v401
    %507 = vmatpush.bf16.msra.mxu0 %v400
    %508 = vmatpush.bf16.msra.mxu0 %v399
    %509 = vmatpush.bf16.msra.mxu0 %v398
    %510 = vmatpush.bf16.msra.mxu0 %v397
    %511 = vmatpush.bf16.msra.mxu0 %v396
    %512 = vmatpush.bf16.msra.mxu0 %v395
    %513 = vmatpush.bf16.msra.mxu0 %v394
    %514 = vmatmul.bf16.gmra.mxu0 %v75
    %v515 = vpop.f32.mrf.mxu0
    %v516 = vadd.f32 %v503, %v515
    %v517 = vpop.f32.mrf.mxu0
    %518 = vdwg.mxu0
    %519 = vmatpush.bf16.msra.mxu0 %v409
    %520 = vmatpush.bf16.msra.mxu0 %v408
    %521 = vmatpush.bf16.msra.mxu0 %v407
    %522 = vmatpush.bf16.msra.mxu0 %v406
    %523 = vmatpush.bf16.msra.mxu0 %v405
    %524 = vmatpush.bf16.msra.mxu0 %v404
    %525 = vmatpush.bf16.msra.mxu0 %v403
    %526 = vmatpush.bf16.msra.mxu0 %v402
    %527 = vmatmul.bf16.gmra.mxu0 %v76
    %v528 = vpop.f32.mrf.mxu0
    %v529 = vadd.f32 %v516, %v528
    %v530 = vpop.f32.mrf.mxu0
    %531 = vdwg.mxu0
    %532 = vmatpush.bf16.msra.mxu0 %v417
    %533 = vmatpush.bf16.msra.mxu0 %v416
    %534 = vmatpush.bf16.msra.mxu0 %v415
    %535 = vmatpush.bf16.msra.mxu0 %v414
    %536 = vmatpush.bf16.msra.mxu0 %v413
    %537 = vmatpush.bf16.msra.mxu0 %v412
    %538 = vmatpush.bf16.msra.mxu0 %v411
    %539 = vmatpush.bf16.msra.mxu0 %v410
    %540 = vmatmul.bf16.gmra.mxu0 %v77
    %v541 = vpop.f32.mrf.mxu0
    %v542 = vadd.f32 %v529, %v541
    %v543 = vpop.f32.mrf.mxu0
    %544 = vdwg.mxu0
    %545 = vmatpush.bf16.msra.mxu0 %v425
    %546 = vmatpush.bf16.msra.mxu0 %v424
    %547 = vmatpush.bf16.msra.mxu0 %v423
    %548 = vmatpush.bf16.msra.mxu0 %v422
    %549 = vmatpush.bf16.msra.mxu0 %v421
    %550 = vmatpush.bf16.msra.mxu0 %v420
    %551 = vmatpush.bf16.msra.mxu0 %v419
    %552 = vmatpush.bf16.msra.mxu0 %v418
    %553 = vmatmul.bf16.gmra.mxu0 %v78
    %v554 = vpop.f32.mrf.mxu0
    %v555 = vadd.f32 %v542, %v554
    %v556 = vpop.f32.mrf.mxu0
    %557 = vdwg.mxu0
    %558 = vmatpush.bf16.msra.mxu0 0
    %559 = vmatpush.bf16.msra.mxu0 0
    %560 = vmatpush.bf16.msra.mxu0 0
    %561 = vmatpush.bf16.msra.mxu0 0
    %562 = vmatpush.bf16.msra.mxu0 0
    %563 = vmatpush.bf16.msra.mxu0 0
    %564 = vmatpush.bf16.msra.mxu0 0
    %565 = vmatpush.bf16.msra.mxu0 %v426
    %566 = vmatmul.bf16.gmra.mxu0 %v478
    %v567 = vpop.f32.mrf.mxu0
    %v568 = vadd.f32 %v555, %v567
    %v569 = vpop.f32.mrf.mxu0
    %570 = vdwg.mxu0
    %vm571 = vcmp.gt.f32.partialorder %v568, 0.0
    %v572 = vmul.f32 %v568, 0.2
    %v573 = vsel %vm571, %v568, %v572
    %v574 = vpack.c.bf16 %v573, %v573
    %v575 = vld [vmem:[%s3] sm:$0xf]
    %v576 = vld [vmem:[%s3 + $0x4] sm:$0xf]
    %v577 = vld [vmem:[%s3 + $0x8] sm:$0xf]
    %v578 = vld [vmem:[%s3 + $0xc] sm:$0xf]
    %v579 = vld [vmem:[%s3 + $0x10] sm:$0xf]
    %v580 = vld [vmem:[%s3 + $0x14] sm:$0xf]
    %v581 = vld [vmem:[%s3 + $0x18] sm:$0xf]
    %v582 = vld [vmem:[%s3 + $0x1c] sm:$0xf]
    %v583 = vld [vmem:[%s3 + $0x20] sm:$0xf]
    %v584 = vld [vmem:[%s3 + $0x24] sm:$0xf]
    %v585 = vld [vmem:[%s3 + $0x28] sm:$0xf]
    %v586 = vld [vmem:[%s3 + $0x2c] sm:$0xf]
    %v587 = vld [vmem:[%s3 + $0x30] sm:$0xf]
    %v588 = vld [vmem:[%s3 + $0x34] sm:$0xf]
    %v589 = vld [vmem:[%s3 + $0x38] sm:$0xf]
    %v590 = vld [vmem:[%s3 + $0x3c] sm:$0xf]
    %v591 = vld [vmem:[%s4] sm:$0x1]
    %v593 = vperm.slane %v591, 0
    %v611 = vunpack.c.l.b16 %v575
    %v612 = vunpack.c.l.b16 %v576
    %v613 = vunpack.c.l.b16 %v577
    %v614 = vunpack.c.l.b16 %v578
    %v615 = vunpack.c.l.b16 %v579
    %v616 = vunpack.c.l.b16 %v580
    %v617 = vunpack.c.l.b16 %v581
    %v618 = vunpack.c.l.b16 %v582
    %v619 = vunpack.c.l.b16 %v583
    %v620 = vunpack.c.l.b16 %v584
    %v621 = vunpack.c.l.b16 %v585
    %v622 = vunpack.c.l.b16 %v586
    %v623 = vunpack.c.l.b16 %v587
    %v624 = vunpack.c.l.b16 %v588
    %v625 = vunpack.c.l.b16 %v589
    %v626 = vunpack.c.l.b16 %v590
    %v627 = vpack.c.b16 %v612, %v611
    %v628 = vpack.c.b16 %v614, %v613
    %v629 = vpack.c.b16 %v616, %v615
    %v630 = vpack.c.b16 %v618, %v617
    %v631 = vpack.c.b16 %v620, %v619
    %v632 = vpack.c.b16 %v622, %v621
    %v633 = vpack.c.b16 %v624, %v623
    %v634 = vpack.c.b16 %v626, %v625
    %643 = vmatpush.bf16.msra.mxu0 %v634
    %644 = vmatpush.bf16.msra.mxu0 %v633
    %645 = vmatpush.bf16.msra.mxu0 %v632
    %646 = vmatpush.bf16.msra.mxu0 %v631
    %647 = vmatpush.bf16.msra.mxu0 %v630
    %648 = vmatpush.bf16.msra.mxu0 %v629
    %649 = vmatpush.bf16.msra.mxu0 %v628
    %650 = vmatpush.bf16.msra.mxu0 %v627
    %651 = vmatmul.bf16.gmra.mxu0 %v574
    %v652 = vpop.f32.mrf.mxu0
    %v653 = vadd.f32 %v593, %v652
    %v654 = vpop.f32.mrf.mxu0
    %655 = vdwg.mxu0
    %vm656 = vcmp.gt.f32.partialorder %v653, 0.0
    %v657 = vmul.f32 %v653, 0.2
    %v658 = vsel %vm656, %v653, %v657
    %v659 = vpack.c.bf16 %v658, %v658
    %v660 = vld [vmem:[%s5] sm:$0xf]
    %v661 = vld [vmem:[%s5 + $0x4] sm:$0xf]
    %v662 = vld [vmem:[%s5 + $0x8] sm:$0xf]
    %v663 = vld [vmem:[%s5 + $0xc] sm:$0xf]
    %v664 = vld [vmem:[%s5 + $0x10] sm:$0xf]
    %v665 = vld [vmem:[%s5 + $0x14] sm:$0xf]
    %v666 = vld [vmem:[%s5 + $0x18] sm:$0xf]
    %v667 = vld [vmem:[%s5 + $0x1c] sm:$0xf]
    %v668 = vld [vmem:[%s6] sm:$0x1]
    %v670 = vperm.slane %v668, 0
    %v680 = vunpack.c.l.b16 %v660
    %v681 = vunpack.c.l.b16 %v661
    %v682 = vunpack.c.l.b16 %v662
    %v683 = vunpack.c.l.b16 %v663
    %v684 = vunpack.c.l.b16 %v664
    %v685 = vunpack.c.l.b16 %v665
    %v686 = vunpack.c.l.b16 %v666
    %v687 = vunpack.c.l.b16 %v667
    %v688 = vpack.c.b16 %v681, %v680
    %v689 = vpack.c.b16 %v683, %v682
    %v690 = vpack.c.b16 %v685, %v684
    %v691 = vpack.c.b16 %v687, %v686
    %vm696 = vcmask 523264
    %v698 = vsel %vm696, %v659, 0
    %700 = vmatpush.bf16.msra.mxu0 0
    %701 = vmatpush.bf16.msra.mxu0 0
    %702 = vmatpush.bf16.msra.mxu0 0
    %703 = vmatpush.bf16.msra.mxu0 0
    %704 = vmatpush.bf16.msra.mxu0 %v691
    %705 = vmatpush.bf16.msra.mxu0 %v690
    %706 = vmatpush.bf16.msra.mxu0 %v689
    %707 = vmatpush.bf16.msra.mxu0 %v688
    %708 = vmatmul.bf16.gmra.mxu0 %v698
    %v709 = vpop.f32.mrf.mxu0
    %v710 = vadd.f32 %v670, %v709
    %v711 = vpop.f32.mrf.mxu0
    %712 = vdwg.mxu0
    %vm713 = vcmp.gt.f32.partialorder %v710, 0.0
    %v714 = vmul.f32 %v710, 0.2
    %v715 = vsel %vm713, %v710, %v714
    %v716 = vld [vmem:[%s7] sm:$0x1]
    %v717 = vpack.c.bf16 %v715, %v715
    %v718 = vld [vmem:[#allocation2] sm:$0x1]
    %720 = vset.pattern.permute.xlu0 0
    %721 = vperm.xlu0 %720, %v718
    %v722 = vpop.permute.xlu0 %721
    %v724 = vperm.slane %v722, 0
    %vm725 = vcmask 261120
    %v727 = vsel %vm725, %v716, 0
    %v730 = vsel %vm725, %v717, 0
    %732 = vmatpush.bf16.xpose.msra.mxu0 0
    %733 = vmatpush.bf16.xpose.msra.mxu0 0
    %734 = vmatpush.bf16.xpose.msra.mxu0 0
    %735 = vmatpush.bf16.xpose.msra.mxu0 0
    %736 = vmatpush.bf16.xpose.msra.mxu0 0
    %737 = vmatpush.bf16.xpose.msra.mxu0 0
    %738 = vmatpush.bf16.xpose.msra.mxu0 0
    %739 = vmatpush.bf16.xpose.msra.mxu0 %v730
    %740 = vmatmul.bf16.gmra.mxu0 %v727
    %v741 = vpop.f32.mrf.mxu0
    %v742 = vadd.f32 %v724, %v741
    %v743 = vpop.f32.mrf.mxu0
    %744 = vdwg.mxu0
    %vm745 = vcmask 8192
    %746 = vst.msk [vmem:[#allocation6] sm:$0x1] %vm745, %v742
    // Predicated region
    $region42: #{tpu_custom_call.1} parent=1 // pred_check
      _
    $region43: #{tpu_custom_call.1} parent=1 // pred_check_branch
      %748 = sbr.rel (0) target = $region45
    $region44: #{tpu_custom_call.1} parent=1 // pred_region
      %750 = vsyncadd [#allocation5], 0
      %s752 = sshll.u32 [#allocation6], 4
      %s753 = int_to_ptr.vmem [resolvable:$true] %s752
      %s754 = sshll.u32 %s9, 4
      %s755 = int_to_ptr.hbm [resolvable:$true] %s754
      %757 = dma.vmem_to_hbm [thread:$0]  %s753, 16, %s755, [#allocation5]
    $region45: #{tpu_custom_call.1} parent=1 // pred_fallthru
      _
    // Predicated region
    $region46: #{tpu_custom_call.1} parent=1 // pred_check
      _
    $region47: #{tpu_custom_call.1} parent=1 // pred_check_branch
      %759 = sbr.rel (0) target = $region49
    $region48: #{tpu_custom_call.1} parent=1 // pred_region
      %761 = dma.done [#allocation5], 16
    $region49: #{tpu_custom_call.1} parent=1 // pred_fallthru
      _
    %762 = vsyncpa [#allocation4], 1
    %763 = vsyncpa [#allocation5], 1

</llo_original>
